<compile_context>
chip_gen: v7x
topology: tpu7x:2x2x1
jax: 0.10.0
libtpu: 0.0.40
codegen_flags: <defaults>
</compile_context>

<pallas_src>
import functools

import jax
import jax.numpy as jnp
from jax.experimental import pallas as pl
from jax.experimental.pallas import tpu as pltpu

NEG_SLOPE = 0.01           # F.leaky_relu default negative_slope
D_IN = 28 * 28             # 784
D_H1, D_H2, D_OUT = 128, 64, 10
D_OUT_PAD = 128            # lane-dense padded logits width


def _leaky_relu(x):
    # single VALU op; equivalent to where(x>0, x, slope*x) for 0 < slope < 1
    return jnp.maximum(x, NEG_SLOPE * x)


def mlp_kernel(x_ref, w1_ref, b1_ref, w2_ref, b2_ref, w3_ref, b3_ref, o_ref):
    # x_ref: (TB, 784) bf16 batch tile; weights bf16, biases f32, all VMEM-resident.
    x = x_ref[...]

    h1 = jnp.dot(x, w1_ref[...], preferred_element_type=jnp.float32)
    h1 = _leaky_relu(h1 + b1_ref[...])

    h2 = jnp.dot(h1.astype(jnp.bfloat16), w2_ref[...],
                 preferred_element_type=jnp.float32)
    h2 = _leaky_relu(h2 + b2_ref[...])

    h3 = jnp.dot(h2.astype(jnp.bfloat16), w3_ref[...],
                 preferred_element_type=jnp.float32)
    o_ref[...] = (h3 + b3_ref[...]).astype(o_ref.dtype)


def _round_up(n, m):
    return ((n + m - 1) // m) * m


def _pick_block(b, block_b):
    """Static batch-tile choice: <= block_b, multiple of 8, and >= 2 grid steps
    when the batch allows it (so the 'parallel' axis can shard across v7x TCs)."""
    bb = min(block_b, _round_up(b, 8))
    if b > 8 and pl.cdiv(b, bb) < 2:
        bb = _round_up(pl.cdiv(b, 2), 8)
    return bb


@functools.partial(jax.jit, static_argnames=("block_b",))
def net_forward(x, params, block_b=256):
    """Forward pass of Net. x: (B, 1, 28, 28) or (B, 784). Returns (B, 10) f32."""
    w1, b1, w2, b2, w3, b3 = params
    b = x.shape[0]
    x2d = x.reshape(b, -1).astype(jnp.bfloat16)   # x.view(x.size(0), -1)

    # bf16 weights for the MXU path; biases stay f32.
    w1b = w1.astype(jnp.bfloat16)
    w2b = w2.astype(jnp.bfloat16)
    b1f = b1.astype(jnp.float32)
    b2f = b2.astype(jnp.float32)

    # Zero-pad layer 3 to 128 output lanes -> unmasked lane-dense stores.
    w3p = jnp.zeros((D_H2, D_OUT_PAD), jnp.bfloat16).at[:, :D_OUT].set(
        w3.astype(jnp.bfloat16))
    b3p = jnp.zeros((1, D_OUT_PAD), jnp.float32).at[:, :D_OUT].set(
        b3.astype(jnp.float32))

    bb = _pick_block(b, block_b)
    grid = (pl.cdiv(b, bb),)

    # Weights/biases use a single full-array block, re-used every grid step.
    def full(shape):
        return pl.BlockSpec(shape, lambda i: tuple(0 for _ in shape))

    out = pl.pallas_call(
        mlp_kernel,
        out_shape=jax.ShapeDtypeStruct((b, D_OUT_PAD), jnp.float32),
        grid_spec=pltpu.PrefetchScalarGridSpec(
            num_scalar_prefetch=0,
            grid=grid,
            in_specs=[
                pl.BlockSpec((bb, D_IN), lambda i: (i, 0)),
                full(w1b.shape), full(b1f.shape),
                full(w2b.shape), full(b2f.shape),
                full(w3p.shape), full(b3p.shape),
            ],
            out_specs=pl.BlockSpec((bb, D_OUT_PAD), lambda i: (i, 0)),
        ),
        compiler_params=pltpu.CompilerParams(
            dimension_semantics=("parallel",),
            vmem_limit_bytes=32 * 1024 * 1024,
        ),
    )(x2d, w1b, b1f, w2b, b2f, w3p, b3p)

    return out[:, :D_OUT]


def init_params(key):
    """Deterministic parameter init mirroring nn.Linear shapes.

    Weights stored as (in_features, out_features); biases as (1, out_features)
    so they broadcast over the batch dimension inside the kernel.
    """
    dims = [(D_IN, D_H1), (D_H1, D_H2), (D_H2, D_OUT)]
    params = []
    for i, (din, dout) in enumerate(dims):
        kw, kb = jax.random.split(jax.random.fold_in(key, i))
        bound = 1.0 / jnp.sqrt(din)  # same bound as torch's default Linear init
        w = jax.random.uniform(kw, (din, dout), jnp.float32, -bound, bound)
        bias = jax.random.uniform(kb, (1, dout), jnp.float32, -bound, bound)
        params += [w, bias]
    return tuple(params)


def reference_forward(x, params):
    w1, b1, w2, b2, w3, b3 = params
    x2d = x.reshape(x.shape[0], -1)
    h1 = jax.nn.leaky_relu(x2d @ w1 + b1, NEG_SLOPE)
    h2 = jax.nn.leaky_relu(h1 @ w2 + b2, NEG_SLOPE)
    return h2 @ w3 + b3


if __name__ == "__main__":
    key = jax.random.PRNGKey(0)
    k_x, k_p = jax.random.split(key)

    batch = 64
    x = jax.random.normal(k_x, (batch, 1, 28, 28), jnp.float32)
    params = init_params(k_p)

    out = net_forward(x, params)          # default block_b; heuristic -> 2 grid steps
    out = jax.block_until_ready(out)

    ref = reference_forward(x, params)
    assert out.shape == (batch, D_OUT), out.shape
    # bf16 MXU inputs with f32 accumulation -> slightly looser tolerance than pure f32
    max_err = jnp.max(jnp.abs(out - ref))
    assert jnp.allclose(out, ref, atol=3e-2, rtol=3e-2), \
        f"mismatch vs reference, max abs err {max_err}"

    print("KERNEL_OK")
</pallas_src>

<mosaic_0001>
module attributes {stable_mosaic.version = 11 : i64} {
  func.func @mlp_kernel(%arg0: i32, %arg1: memref<32x784xbf16, #tpu.memory_space<vmem>>, %arg2: memref<784x128xbf16, #tpu.memory_space<vmem>>, %arg3: memref<1x128xf32, #tpu.memory_space<vmem>>, %arg4: memref<128x64xbf16, #tpu.memory_space<vmem>>, %arg5: memref<1x64xf32, #tpu.memory_space<vmem>>, %arg6: memref<64x128xbf16, #tpu.memory_space<vmem>>, %arg7: memref<1x128xf32, #tpu.memory_space<vmem>>, %arg8: memref<32x128xf32, #tpu.memory_space<vmem>>) attributes {dimension_semantics = [#tpu.dimension_semantics<parallel>], iteration_bounds = array<i64: 2>, scalar_prefetch = 0 : i64, scratch_operands = 0 : i64, tpu.core_type = #tpu.core_type<tc>, window_params = [{transform_indices = @transform_0, window_bounds = array<i64: 32, 784>}, {pipeline_mode = #tpu.pipeline_mode<synchronous>, transform_indices = @transform_1, window_bounds = array<i64: 784, 128>}, {pipeline_mode = #tpu.pipeline_mode<synchronous>, transform_indices = @transform_2, window_bounds = array<i64: 1, 128>}, {pipeline_mode = #tpu.pipeline_mode<synchronous>, transform_indices = @transform_3, window_bounds = array<i64: 128, 64>}, {pipeline_mode = #tpu.pipeline_mode<synchronous>, transform_indices = @transform_4, window_bounds = array<i64: 1, 64>}, {pipeline_mode = #tpu.pipeline_mode<synchronous>, transform_indices = @transform_5, window_bounds = array<i64: 64, 128>}, {pipeline_mode = #tpu.pipeline_mode<synchronous>, transform_indices = @transform_6, window_bounds = array<i64: 1, 128>}, {transform_indices = @transform_7, window_bounds = array<i64: 32, 128>}]} {
    %c0 = arith.constant 0 : index
    %c0_0 = arith.constant 0 : index
    %0 = vector.load %arg1[%c0, %c0_0] : memref<32x784xbf16, #tpu.memory_space<vmem>>, vector<32x784xbf16>
    %c0_1 = arith.constant 0 : index
    %c0_2 = arith.constant 0 : index
    %1 = vector.load %arg2[%c0_1, %c0_2] : memref<784x128xbf16, #tpu.memory_space<vmem>>, vector<784x128xbf16>
    %cst = arith.constant dense<0.000000e+00> : vector<32x128xf32>
    %2 = tpu.matmul %0, %1, %cst {dimension_numbers = #tpu.dot_dimension_numbers<[1], [0], [0], [1], [0, 0, 1, 1], [], []>} : vector<32x784xbf16>, vector<784x128xbf16>, vector<32x128xf32> -> vector<32x128xf32>
    %c0_3 = arith.constant 0 : index
    %c0_4 = arith.constant 0 : index
    %3 = vector.load %arg3[%c0_3, %c0_4] : memref<1x128xf32, #tpu.memory_space<vmem>>, vector<1x128xf32>
    %4 = vector.broadcast %3 : vector<1x128xf32> to vector<32x128xf32>
    %5 = arith.addf %2, %4 : vector<32x128xf32>
    %cst_5 = arith.constant 0.00999999977 : f32
    %6 = vector.broadcast %cst_5 : f32 to vector<32x128xf32>
    %7 = arith.mulf %6, %5 : vector<32x128xf32>
    %8 = arith.maximumf %5, %7 : vector<32x128xf32>
    %9 = arith.truncf %8 : vector<32x128xf32> to vector<32x128xbf16>
    %c0_6 = arith.constant 0 : index
    %c0_7 = arith.constant 0 : index
    %10 = vector.load %arg4[%c0_6, %c0_7] : memref<128x64xbf16, #tpu.memory_space<vmem>>, vector<128x64xbf16>
    %cst_8 = arith.constant dense<0.000000e+00> : vector<32x64xf32>
    %11 = tpu.matmul %9, %10, %cst_8 {dimension_numbers = #tpu.dot_dimension_numbers<[1], [0], [0], [1], [0, 0, 1, 1], [], []>} : vector<32x128xbf16>, vector<128x64xbf16>, vector<32x64xf32> -> vector<32x64xf32>
    %c0_9 = arith.constant 0 : index
    %c0_10 = arith.constant 0 : index
    %12 = vector.load %arg5[%c0_9, %c0_10] : memref<1x64xf32, #tpu.memory_space<vmem>>, vector<1x64xf32>
    %13 = vector.broadcast %12 : vector<1x64xf32> to vector<32x64xf32>
    %14 = arith.addf %11, %13 : vector<32x64xf32>
    %cst_11 = arith.constant 0.00999999977 : f32
    %15 = vector.broadcast %cst_11 : f32 to vector<32x64xf32>
    %16 = arith.mulf %15, %14 : vector<32x64xf32>
    %17 = arith.maximumf %14, %16 : vector<32x64xf32>
    %18 = arith.truncf %17 : vector<32x64xf32> to vector<32x64xbf16>
    %c0_12 = arith.constant 0 : index
    %c0_13 = arith.constant 0 : index
    %19 = vector.load %arg6[%c0_12, %c0_13] : memref<64x128xbf16, #tpu.memory_space<vmem>>, vector<64x128xbf16>
    %cst_14 = arith.constant dense<0.000000e+00> : vector<32x128xf32>
    %20 = tpu.matmul %18, %19, %cst_14 {dimension_numbers = #tpu.dot_dimension_numbers<[1], [0], [0], [1], [0, 0, 1, 1], [], []>} : vector<32x64xbf16>, vector<64x128xbf16>, vector<32x128xf32> -> vector<32x128xf32>
    %c0_15 = arith.constant 0 : index
    %c0_16 = arith.constant 0 : index
    %21 = vector.load %arg7[%c0_15, %c0_16] : memref<1x128xf32, #tpu.memory_space<vmem>>, vector<1x128xf32>
    %22 = vector.broadcast %21 : vector<1x128xf32> to vector<32x128xf32>
    %23 = arith.addf %20, %22 : vector<32x128xf32>
    %c0_17 = arith.constant 0 : index
    %c0_18 = arith.constant 0 : index
    %24 = vector.load %arg8[%c0_17, %c0_18] : memref<32x128xf32, #tpu.memory_space<vmem>>, vector<32x128xf32>
    tpu.vector_store %arg8[%c0_17, %c0_18], %23 {strides = array<i32>} : memref<32x128xf32, #tpu.memory_space<vmem>>, vector<32x128xf32>,
    return
  }
  func.func @transform_0(%arg0: i32) -> (i32, i32) {
    %c0_i32 = arith.constant 0 : i32
    %c0_i32_0 = arith.constant 0 : i32
    return %arg0, %c0_i32 : i32, i32
  }
  func.func @transform_1(%arg0: i32) -> (i32, i32) {
    %c0_i32 = arith.constant 0 : i32
    %c0_i32_0 = arith.constant 0 : i32
    %c0_i32_1 = arith.constant 0 : i32
    return %c0_i32, %c0_i32_0 : i32, i32
  }
  func.func @transform_2(%arg0: i32) -> (i32, i32) {
    %c0_i32 = arith.constant 0 : i32
    %c0_i32_0 = arith.constant 0 : i32
    %c0_i32_1 = arith.constant 0 : i32
    return %c0_i32, %c0_i32_0 : i32, i32
  }
  func.func @transform_3(%arg0: i32) -> (i32, i32) {
    %c0_i32 = arith.constant 0 : i32
    %c0_i32_0 = arith.constant 0 : i32
    %c0_i32_1 = arith.constant 0 : i32
    return %c0_i32, %c0_i32_0 : i32, i32
  }
  func.func @transform_4(%arg0: i32) -> (i32, i32) {
    %c0_i32 = arith.constant 0 : i32
    %c0_i32_0 = arith.constant 0 : i32
    %c0_i32_1 = arith.constant 0 : i32
    return %c0_i32, %c0_i32_0 : i32, i32
  }
  func.func @transform_5(%arg0: i32) -> (i32, i32) {
    %c0_i32 = arith.constant 0 : i32
    %c0_i32_0 = arith.constant 0 : i32
    %c0_i32_1 = arith.constant 0 : i32
    return %c0_i32, %c0_i32_0 : i32, i32
  }
  func.func @transform_6(%arg0: i32) -> (i32, i32) {
    %c0_i32 = arith.constant 0 : i32
    %c0_i32_0 = arith.constant 0 : i32
    %c0_i32_1 = arith.constant 0 : i32
    return %c0_i32, %c0_i32_0 : i32, i32
  }
  func.func @transform_7(%arg0: i32) -> (i32, i32) {
    %c0_i32 = arith.constant 0 : i32
    %c0_i32_0 = arith.constant 0 : i32
    return %arg0, %c0_i32 : i32, i32
  }
}

</mosaic_0001>

<llo_original>
// kernel: net_forward.1
$region0: #{net_forward.1}
  #allocation0 [shape = 'u32[]', space=smem, size = 0x4, offset = 0x4, fixed_abs, tag = 'smem constant byte address 0x4 - core index']
  #allocation1 [shape = 'u32[144,128]{1,0:T(1,128)}', space=vmem, size = 0x12000, scoped, tag = 'internal scratch']
  %s0 = inlined_call_operand.vmem [shape: bf16[64,784], index: 0, kind: input, shape index: {}]
  %s1 = inlined_call_operand.vmem [shape: bf16[784,128], index: 1, kind: input, shape index: {}]
  %s2 = inlined_call_operand.vmem [shape: f32[1,128], index: 2, kind: input, shape index: {}]
  %s3 = inlined_call_operand.vmem [shape: bf16[128,64], index: 3, kind: input, shape index: {}]
  %s4 = inlined_call_operand.vmem [shape: f32[1,64], index: 4, kind: input, shape index: {}]
  %s5 = inlined_call_operand.vmem [shape: bf16[64,128], index: 5, kind: input, shape index: {}]
  %s6 = inlined_call_operand.vmem [shape: f32[1,128], index: 6, kind: input, shape index: {}]
  %s7 = inlined_call_operand.vmem [shape: f32[64,128], index: 7, kind: output, shape index: {}]
  %s8 = sld [smem:[#allocation0]]
  $region61: #{net_forward.1} parent=0
    _
  %s10 = ssub.s32 1, %s8
  %s11 = scalar_select 0, %s10, %s8
  loop: start=0, step=1, limit=4
  $region2: #{net_forward.1} parent=0 // loop_pre_header
    _
  $region3: #{net_forward.1} parent=0 // loop_header
    %s13 = sphi 0, %s17
    %p14 = scmp.ge.s32.totalorder %s13, 4
    %s23 = sphi 0, %s25
    %s26 = sphi 0, %s23
    %s27 = sphi 0, %s26
    %s43 = sphi 0, %s27
    %s47 = sphi 0, %s47
    %s49 = sphi 0, %s47
    %s50 = sphi 0, %s49
    %s64 = sphi 0, %s50
    %s68 = sphi 0, %s68
    %s70 = sphi 0, %s68
    %s71 = sphi 0, %s70
    %s85 = sphi 0, %s71
    %s89 = sphi 0, %s89
    %s91 = sphi 0, %s89
    %s92 = sphi 0, %s91
    %s106 = sphi 0, %s92
    %s110 = sphi 0, %s110
    %s112 = sphi 0, %s110
    %s113 = sphi 0, %s112
    %s127 = sphi 0, %s113
    %s131 = sphi 0, %s131
    %s133 = sphi 0, %s131
    %s134 = sphi 0, %s133
    %s148 = sphi 0, %s134
    %s152 = sphi 0, %s152
    %s154 = sphi 0, %s152
    %s155 = sphi 0, %s154
    %s169 = sphi 0, %s155
    %s175 = sphi 0, %s177
    %s178 = sphi 0, %s175
    %s179 = sphi 0, %s178
    %s195 = sphi 0, %s179
  $region4: #{net_forward.1} parent=0 // loop_header_branch
    %16 = sbr.rel (%p14) target = $region8
  $region5: #{net_forward.1} parent=0 // loop_body
    %s18 = ssub.s32 %s13, 1
    %s19 = ssub.s32 %s13, 2
    %s20 = sadd.s32 %s13, 1
    %s21 = ssub.s32 %s13, %s20
    %p22 = scmp.eq.s32.totalorder %s21, 0
    %s24 = sadd.s32 %s23, 1
    %s25 = scalar_select %p22, %s23, %s24
    %p28 = pneg %p22
    %p29 = scmp.eq.s32.totalorder %s13, 1
    %p30 = por %p28, %p29
    %p31 = scmp.ne.s32.totalorder %s23, %s26
    %p32 = scmp.eq.s32.totalorder %s13, 0
    %p33 = por %p31, %p32
    %p34 = scmp.ne.s32.totalorder %s23, %s26
    %p35 = scmp.eq.s32.totalorder %s18, 1
    %p36 = por %p34, %p35
    %p37 = scmp.ne.s32.totalorder %s26, %s27
    %p38 = scmp.eq.s32.totalorder %s18, 0
    %p39 = por %p37, %p38
    %p40 = scmp.ne.s32.totalorder %s26, %s27
    %p41 = scmp.eq.s32.totalorder %s19, 1
    %p42 = por %p40, %p41
    %p44 = scmp.ne.s32.totalorder %s27, %s43
    %p45 = scmp.eq.s32.totalorder %s19, 0
    %p46 = por %p44, %p45
    %s48 = sadd.s32 %s47, 1
    %p51 = scmp.eq.s32.totalorder %s13, 1
    %p52 = scmp.ne.s32.totalorder %s47, %s49
    %p53 = scmp.eq.s32.totalorder %s13, 0
    %p54 = por %p52, %p53
    %p55 = scmp.ne.s32.totalorder %s47, %s49
    %p56 = scmp.eq.s32.totalorder %s18, 1
    %p57 = por %p55, %p56
    %p58 = scmp.ne.s32.totalorder %s49, %s50
    %p59 = scmp.eq.s32.totalorder %s18, 0
    %p60 = por %p58, %p59
    %p61 = scmp.ne.s32.totalorder %s49, %s50
    %p62 = scmp.eq.s32.totalorder %s19, 1
    %p63 = por %p61, %p62
    %p65 = scmp.ne.s32.totalorder %s50, %s64
    %p66 = scmp.eq.s32.totalorder %s19, 0
    %p67 = por %p65, %p66
    %s69 = sadd.s32 %s68, 1
    %p72 = scmp.eq.s32.totalorder %s13, 1
    %p73 = scmp.ne.s32.totalorder %s68, %s70
    %p74 = scmp.eq.s32.totalorder %s13, 0
    %p75 = por %p73, %p74
    %p76 = scmp.ne.s32.totalorder %s68, %s70
    %p77 = scmp.eq.s32.totalorder %s18, 1
    %p78 = por %p76, %p77
    %p79 = scmp.ne.s32.totalorder %s70, %s71
    %p80 = scmp.eq.s32.totalorder %s18, 0
    %p81 = por %p79, %p80
    %p82 = scmp.ne.s32.totalorder %s70, %s71
    %p83 = scmp.eq.s32.totalorder %s19, 1
    %p84 = por %p82, %p83
    %p86 = scmp.ne.s32.totalorder %s71, %s85
    %p87 = scmp.eq.s32.totalorder %s19, 0
    %p88 = por %p86, %p87
    %s90 = sadd.s32 %s89, 1
    %p93 = scmp.eq.s32.totalorder %s13, 1
    %p94 = scmp.ne.s32.totalorder %s89, %s91
    %p95 = scmp.eq.s32.totalorder %s13, 0
    %p96 = por %p94, %p95
    %p97 = scmp.ne.s32.totalorder %s89, %s91
    %p98 = scmp.eq.s32.totalorder %s18, 1
    %p99 = por %p97, %p98
    %p100 = scmp.ne.s32.totalorder %s91, %s92
    %p101 = scmp.eq.s32.totalorder %s18, 0
    %p102 = por %p100, %p101
    %p103 = scmp.ne.s32.totalorder %s91, %s92
    %p104 = scmp.eq.s32.totalorder %s19, 1
    %p105 = por %p103, %p104
    %p107 = scmp.ne.s32.totalorder %s92, %s106
    %p108 = scmp.eq.s32.totalorder %s19, 0
    %p109 = por %p107, %p108
    %s111 = sadd.s32 %s110, 1
    %p114 = scmp.eq.s32.totalorder %s13, 1
    %p115 = scmp.ne.s32.totalorder %s110, %s112
    %p116 = scmp.eq.s32.totalorder %s13, 0
    %p117 = por %p115, %p116
    %p118 = scmp.ne.s32.totalorder %s110, %s112
    %p119 = scmp.eq.s32.totalorder %s18, 1
    %p120 = por %p118, %p119
    %p121 = scmp.ne.s32.totalorder %s112, %s113
    %p122 = scmp.eq.s32.totalorder %s18, 0
    %p123 = por %p121, %p122
    %p124 = scmp.ne.s32.totalorder %s112, %s113
    %p125 = scmp.eq.s32.totalorder %s19, 1
    %p126 = por %p124, %p125
    %p128 = scmp.ne.s32.totalorder %s113, %s127
    %p129 = scmp.eq.s32.totalorder %s19, 0
    %p130 = por %p128, %p129
    %s132 = sadd.s32 %s131, 1
    %p135 = scmp.eq.s32.totalorder %s13, 1
    %p136 = scmp.ne.s32.totalorder %s131, %s133
    %p137 = scmp.eq.s32.totalorder %s13, 0
    %p138 = por %p136, %p137
    %p139 = scmp.ne.s32.totalorder %s131, %s133
    %p140 = scmp.eq.s32.totalorder %s18, 1
    %p141 = por %p139, %p140
    %p142 = scmp.ne.s32.totalorder %s133, %s134
    %p143 = scmp.eq.s32.totalorder %s18, 0
    %p144 = por %p142, %p143
    %p145 = scmp.ne.s32.totalorder %s133, %s134
    %p146 = scmp.eq.s32.totalorder %s19, 1
    %p147 = por %p145, %p146
    %p149 = scmp.ne.s32.totalorder %s134, %s148
    %p150 = scmp.eq.s32.totalorder %s19, 0
    %p151 = por %p149, %p150
    %s153 = sadd.s32 %s152, 1
    %p156 = scmp.eq.s32.totalorder %s13, 1
    %p157 = scmp.ne.s32.totalorder %s152, %s154
    %p158 = scmp.eq.s32.totalorder %s13, 0
    %p159 = por %p157, %p158
    %p160 = scmp.ne.s32.totalorder %s152, %s154
    %p161 = scmp.eq.s32.totalorder %s18, 1
    %p162 = por %p160, %p161
    %p163 = scmp.ne.s32.totalorder %s154, %s155
    %p164 = scmp.eq.s32.totalorder %s18, 0
    %p165 = por %p163, %p164
    %p166 = scmp.ne.s32.totalorder %s154, %s155
    %p167 = scmp.eq.s32.totalorder %s19, 1
    %p168 = por %p166, %p167
    %p170 = scmp.ne.s32.totalorder %s155, %s169
    %p171 = scmp.eq.s32.totalorder %s19, 0
    %p172 = por %p170, %p171
    %s173 = ssub.s32 %s13, %s20
    %p174 = scmp.eq.s32.totalorder %s173, 0
    %s176 = sadd.s32 %s175, 1
    %s177 = scalar_select %p174, %s175, %s176
    %p180 = pneg %p174
    %p181 = scmp.eq.s32.totalorder %s13, 1
    %p182 = por %p180, %p181
    %p183 = scmp.ne.s32.totalorder %s175, %s178
    %p184 = scmp.eq.s32.totalorder %s13, 0
    %p185 = por %p183, %p184
    %p186 = scmp.ne.s32.totalorder %s175, %s178
    %p187 = scmp.eq.s32.totalorder %s18, 1
    %p188 = por %p186, %p187
    %p189 = scmp.ne.s32.totalorder %s178, %s179
    %p190 = scmp.eq.s32.totalorder %s18, 0
    %p191 = por %p189, %p190
    %p192 = scmp.ne.s32.totalorder %s178, %s179
    %p193 = scmp.eq.s32.totalorder %s19, 1
    %p194 = por %p192, %p193
    %p196 = scmp.ne.s32.totalorder %s179, %s195
    %p197 = scmp.eq.s32.totalorder %s19, 0
    %p198 = por %p196, %p197
    %p199 = scmp.le.s32.totalorder 1, %s13
    %p200 = scmp.lt.s32.totalorder %s13, 3
    %p201 = pnand %p199, %p200
    %p202 = pneg %p201
    // Predicated region
    $region9: #{net_forward.1} parent=5 // pred_check
      _
    $region10: #{net_forward.1} parent=5 // pred_check_branch
      %204 = sbr.rel (%p201) target = $region12
    $region11: #{net_forward.1} parent=5 // pred_region
      %s205 = ssub.s32 %s13, 1
      // Predicated region
      $region13: #{net_forward.1} parent=11 // pred_check
        %p206 = pneg %p60
      $region14: #{net_forward.1} parent=11 // pred_check_branch
        %208 = sbr.rel (%p206) target = $region16
      $region15: #{net_forward.1} parent=11 // pred_region
        _
      $region16: #{net_forward.1} parent=11 // pred_fallthru
        _
      // Predicated region
      $region17: #{net_forward.1} parent=11 // pred_check
        %p209 = pneg %p81
      $region18: #{net_forward.1} parent=11 // pred_check_branch
        %211 = sbr.rel (%p209) target = $region20
      $region19: #{net_forward.1} parent=11 // pred_region
        _
      $region20: #{net_forward.1} parent=11 // pred_fallthru
        _
      // Predicated region
      $region21: #{net_forward.1} parent=11 // pred_check
        %p212 = pneg %p102
      $region22: #{net_forward.1} parent=11 // pred_check_branch
        %214 = sbr.rel (%p212) target = $region24
      $region23: #{net_forward.1} parent=11 // pred_region
        _
      $region24: #{net_forward.1} parent=11 // pred_fallthru
        _
      // Predicated region
      $region25: #{net_forward.1} parent=11 // pred_check
        %p215 = pneg %p123
      $region26: #{net_forward.1} parent=11 // pred_check_branch
        %217 = sbr.rel (%p215) target = $region28
      $region27: #{net_forward.1} parent=11 // pred_region
        _
      $region28: #{net_forward.1} parent=11 // pred_fallthru
        _
      // Predicated region
      $region29: #{net_forward.1} parent=11 // pred_check
        %p218 = pneg %p144
      $region30: #{net_forward.1} parent=11 // pred_check_branch
        %220 = sbr.rel (%p218) target = $region32
      $region31: #{net_forward.1} parent=11 // pred_region
        _
      $region32: #{net_forward.1} parent=11 // pred_fallthru
        _
      // Predicated region
      $region33: #{net_forward.1} parent=11 // pred_check
        %p221 = pneg %p165
      $region34: #{net_forward.1} parent=11 // pred_check_branch
        %223 = sbr.rel (%p221) target = $region36
      $region35: #{net_forward.1} parent=11 // pred_region
        _
      $region36: #{net_forward.1} parent=11 // pred_fallthru
        _
    $region12: #{net_forward.1} parent=5 // pred_fallthru
      _
    %p224 = scmp.lt.s32.totalorder %s13, 2
    // Predicated region
    $region37: #{net_forward.1} parent=5 // pred_check
      %p225 = pneg %p224
    $region38: #{net_forward.1} parent=5 // pred_check_branch
      %227 = sbr.rel (%p225) target = $region40
    $region39: #{net_forward.1} parent=5 // pred_region
      // Predicated region
      $region41: #{net_forward.1} parent=39 // pred_check
        %p228 = pneg %p33
      $region42: #{net_forward.1} parent=39 // pred_check_branch
        %230 = sbr.rel (%p228) target = $region44
      $region43: #{net_forward.1} parent=39 // pred_region
        %s231 = smul.u32 4, %s13
        %p232 = scmp.lt.s32.totalorder %s231, 7
        %s233 = scalar_select %p232, %s231, 7
        %s234 = smul.addr %s233, 7
        %s235 = smul.addr %s234, 4
        %s236 = scalar_lea.vmem %s0, %s235
        %s237 = smul.u32 4, %s13
      $region44: #{net_forward.1} parent=39 // pred_fallthru
        _
    $region40: #{net_forward.1} parent=5 // pred_fallthru
      _
    %p238 = scmp.le.s32.totalorder 1, %s13
    %p239 = scmp.lt.s32.totalorder %s13, 3
    %p240 = pnand %p238, %p239
    %p241 = pneg %p240
    // Predicated region
    $region45: #{net_forward.1} parent=5 // pred_check
      _
    $region46: #{net_forward.1} parent=5 // pred_check_branch
      %243 = sbr.rel (%p240) target = $region48
    $region47: #{net_forward.1} parent=5 // pred_region
      %s244 = ssub.s32 %s13, 1
      %s245 = smul.u32 4, %s18
      %p246 = scmp.lt.s32.totalorder %s245, 7
      %s247 = scalar_select %p246, %s245, 7
      %s248 = smul.addr %s247, 7
      %s249 = smul.addr %s248, 4
      %s250 = scalar_lea.vmem %s0, %s249
      %p251 = pneg %p39
      %p252 = pneg %p36
      %p253 = pneg %p60
      %p254 = pneg %p57
      %p255 = pneg %p81
      %p256 = pneg %p78
      %p257 = pneg %p102
      %p258 = pneg %p99
      %p259 = pneg %p123
      %p260 = pneg %p120
      %p261 = pneg %p144
      %p262 = pneg %p141
      %p263 = pneg %p165
      %p264 = pneg %p162
      %p265 = pneg %p191
      %p266 = pneg %p188
      %s267 = smul.u32 4, %s18
      %p268 = scmp.lt.s32.totalorder %s267, 7
      %s269 = scalar_select %p268, %s267, 7
      %s270 = smul.addr %s269, 8
      %s271 = scalar_lea.vmem %s7, %s270
      %s272 = smul.u32 4, %s18
      %p273 = scmp.lt.s32.totalorder %s272, 7
      %s274 = scalar_select %p273, %s272, 7
      %s275 = smul.addr %s274, 7
      %s276 = smul.addr %s275, 4
      %s277 = scalar_lea.vmem %s0, %s276
      %s278 = smul.u32 4, %s18
      %s279 = smul.u32 4, %s18
      %p280 = scmp.lt.s32.totalorder %s279, 7
      %s281 = scalar_select %p280, %s279, 7
      %s282 = smul.addr %s281, 8
      %s283 = scalar_lea.vmem %s7, %s282
      %s284 = smul.u32 4, %s18
      %v286 = vld [vmem:[%s277] sm:$0xff]
      %v287 = vld [vmem:[%s277 + $0x8] sm:$0xff]
      %v288 = vld [vmem:[%s277 + $0x10] sm:$0xff]
      %v289 = vld [vmem:[%s277 + $0x18] sm:$0xf]
      %v290 = vld [vmem:[%s277 + $0x1c] sm:$0xff]
      %v291 = vld [vmem:[%s277 + $0x24] sm:$0xff]
      %v292 = vld [vmem:[%s277 + $0x2c] sm:$0xff]
      %v293 = vld [vmem:[%s277 + $0x34] sm:$0xf]
      %v294 = vld [vmem:[%s277 + $0x38] sm:$0xff]
      %v295 = vld [vmem:[%s277 + $0x40] sm:$0xff]
      %v296 = vld [vmem:[%s277 + $0x48] sm:$0xff]
      %v297 = vld [vmem:[%s277 + $0x50] sm:$0xf]
      %v298 = vld [vmem:[%s277 + $0x54] sm:$0xff]
      %v299 = vld [vmem:[%s277 + $0x5c] sm:$0xff]
      %v300 = vld [vmem:[%s277 + $0x64] sm:$0xff]
      %v301 = vld [vmem:[%s277 + $0x6c] sm:$0xf]
      %v302 = vld [vmem:[%s1] sm:$0xf]
      %v303 = vld [vmem:[%s1 + $0x4] sm:$0xf]
      %v304 = vld [vmem:[%s1 + $0x8] sm:$0xf]
      %v305 = vld [vmem:[%s1 + $0xc] sm:$0xf]
      %v306 = vld [vmem:[%s1 + $0x10] sm:$0xf]
      %v307 = vld [vmem:[%s1 + $0x14] sm:$0xf]
      %v308 = vld [vmem:[%s1 + $0x18] sm:$0xf]
      %v309 = vld [vmem:[%s1 + $0x1c] sm:$0xf]
      %v310 = vld [vmem:[%s1 + $0x20] sm:$0xf]
      %v311 = vld [vmem:[%s1 + $0x24] sm:$0xf]
      %v312 = vld [vmem:[%s1 + $0x28] sm:$0xf]
      %v313 = vld [vmem:[%s1 + $0x2c] sm:$0xf]
      %v314 = vld [vmem:[%s1 + $0x30] sm:$0xf]
      %v315 = vld [vmem:[%s1 + $0x34] sm:$0xf]
      %v316 = vld [vmem:[%s1 + $0x38] sm:$0xf]
      %v317 = vld [vmem:[%s1 + $0x3c] sm:$0xf]
      %v318 = vld [vmem:[%s1 + $0x40] sm:$0xf]
      %v319 = vld [vmem:[%s1 + $0x44] sm:$0xf]
      %v320 = vld [vmem:[%s1 + $0x48] sm:$0xf]
      %v321 = vld [vmem:[%s1 + $0x4c] sm:$0xf]
      %v322 = vld [vmem:[%s1 + $0x50] sm:$0xf]
      %v323 = vld [vmem:[%s1 + $0x54] sm:$0xf]
      %v324 = vld [vmem:[%s1 + $0x58] sm:$0xf]
      %v325 = vld [vmem:[%s1 + $0x5c] sm:$0xf]
      %v326 = vld [vmem:[%s1 + $0x60] sm:$0xf]
      %v327 = vld [vmem:[%s1 + $0x64] sm:$0xf]
      %v328 = vld [vmem:[%s1 + $0x68] sm:$0xf]
      %v329 = vld [vmem:[%s1 + $0x6c] sm:$0xf]
      %v330 = vld [vmem:[%s1 + $0x70] sm:$0xf]
      %v331 = vld [vmem:[%s1 + $0x74] sm:$0xf]
      %v332 = vld [vmem:[%s1 + $0x78] sm:$0xf]
      %v333 = vld [vmem:[%s1 + $0x7c] sm:$0xf]
      %v334 = vld [vmem:[%s1 + $0x80] sm:$0xf]
      %v335 = vld [vmem:[%s1 + $0x84] sm:$0xf]
      %v336 = vld [vmem:[%s1 + $0x88] sm:$0xf]
      %v337 = vld [vmem:[%s1 + $0x8c] sm:$0xf]
      %v338 = vld [vmem:[%s1 + $0x90] sm:$0xf]
      %v339 = vld [vmem:[%s1 + $0x94] sm:$0xf]
      %v340 = vld [vmem:[%s1 + $0x98] sm:$0xf]
      %v341 = vld [vmem:[%s1 + $0x9c] sm:$0xf]
      %v342 = vld [vmem:[%s1 + $0xa0] sm:$0xf]
      %v343 = vld [vmem:[%s1 + $0xa4] sm:$0xf]
      %v344 = vld [vmem:[%s1 + $0xa8] sm:$0xf]
      %v345 = vld [vmem:[%s1 + $0xac] sm:$0xf]
      %v346 = vld [vmem:[%s1 + $0xb0] sm:$0xf]
      %v347 = vld [vmem:[%s1 + $0xb4] sm:$0xf]
      %v348 = vld [vmem:[%s1 + $0xb8] sm:$0xf]
      %v349 = vld [vmem:[%s1 + $0xbc] sm:$0xf]
      %v350 = vld [vmem:[%s1 + $0xc0] sm:$0xf]
      %v351 = vld [vmem:[%s1 + $0xc4] sm:$0xf]
      %v352 = vld [vmem:[%s1 + $0xc8] sm:$0xf]
      %v353 = vld [vmem:[%s1 + $0xcc] sm:$0xf]
      %v354 = vld [vmem:[%s1 + $0xd0] sm:$0xf]
      %v355 = vld [vmem:[%s1 + $0xd4] sm:$0xf]
      %v356 = vld [vmem:[%s1 + $0xd8] sm:$0xf]
      %v357 = vld [vmem:[%s1 + $0xdc] sm:$0xf]
      %v358 = vld [vmem:[%s1 + $0xe0] sm:$0xf]
      %v359 = vld [vmem:[%s1 + $0xe4] sm:$0xf]
      %v360 = vld [vmem:[%s1 + $0xe8] sm:$0xf]
      %v361 = vld [vmem:[%s1 + $0xec] sm:$0xf]
      %v362 = vld [vmem:[%s1 + $0xf0] sm:$0xf]
      %v363 = vld [vmem:[%s1 + $0xf4] sm:$0xf]
      %v364 = vld [vmem:[%s1 + $0xf8] sm:$0xf]
      %v365 = vld [vmem:[%s1 + $0xfc] sm:$0xf]
      %v366 = vld [vmem:[%s1 + $0x100] sm:$0xf]
      %v367 = vld [vmem:[%s1 + $0x104] sm:$0xf]
      %v368 = vld [vmem:[%s1 + $0x108] sm:$0xf]
      %v369 = vld [vmem:[%s1 + $0x10c] sm:$0xf]
      %v370 = vld [vmem:[%s1 + $0x110] sm:$0xf]
      %v371 = vld [vmem:[%s1 + $0x114] sm:$0xf]
      %v372 = vld [vmem:[%s1 + $0x118] sm:$0xf]
      %v373 = vld [vmem:[%s1 + $0x11c] sm:$0xf]
      %v374 = vld [vmem:[%s1 + $0x120] sm:$0xf]
      %v375 = vld [vmem:[%s1 + $0x124] sm:$0xf]
      %v376 = vld [vmem:[%s1 + $0x128] sm:$0xf]
      %v377 = vld [vmem:[%s1 + $0x12c] sm:$0xf]
      %v378 = vld [vmem:[%s1 + $0x130] sm:$0xf]
      %v379 = vld [vmem:[%s1 + $0x134] sm:$0xf]
      %v380 = vld [vmem:[%s1 + $0x138] sm:$0xf]
      %v381 = vld [vmem:[%s1 + $0x13c] sm:$0xf]
      %v382 = vld [vmem:[%s1 + $0x140] sm:$0xf]
      %v383 = vld [vmem:[%s1 + $0x144] sm:$0xf]
      %v384 = vld [vmem:[%s1 + $0x148] sm:$0xf]
      %v385 = vld [vmem:[%s1 + $0x14c] sm:$0xf]
      %v386 = vld [vmem:[%s1 + $0x150] sm:$0xf]
      %v387 = vld [vmem:[%s1 + $0x154] sm:$0xf]
      %v388 = vld [vmem:[%s1 + $0x158] sm:$0xf]
      %v389 = vld [vmem:[%s1 + $0x15c] sm:$0xf]
      %v390 = vld [vmem:[%s1 + $0x160] sm:$0xf]
      %v391 = vld [vmem:[%s1 + $0x164] sm:$0xf]
      %v392 = vld [vmem:[%s1 + $0x168] sm:$0xf]
      %v393 = vld [vmem:[%s1 + $0x16c] sm:$0xf]
      %v394 = vld [vmem:[%s1 + $0x170] sm:$0xf]
      %v395 = vld [vmem:[%s1 + $0x174] sm:$0xf]
      %v396 = vld [vmem:[%s1 + $0x178] sm:$0xf]
      %v397 = vld [vmem:[%s1 + $0x17c] sm:$0xf]
      %v398 = vld [vmem:[%s1 + $0x180] sm:$0xf]
      %v399 = vld [vmem:[%s1 + $0x184] sm:$0xf]
      %v400 = vld [vmem:[%s2] sm:$0x1]
      %v402 = vlaneseq
      %v403 = vshrl.u32 %v402, 7
      %v404 = vsub.s32 0, %v403
      %v405 = vrot.slane %v400, %v404
      %v423 = vunpack.c.l.b16 %v286
      %v424 = vunpack.c.h.b16 %v286
      %v425 = vunpack.c.l.b16 %v287
      %v426 = vunpack.c.h.b16 %v287
      %v427 = vunpack.c.l.b16 %v288
      %v428 = vunpack.c.h.b16 %v288
      %v429 = vunpack.c.l.b16 %v289
      %v430 = vunpack.c.l.b16 %v290
      %v431 = vunpack.c.h.b16 %v290
      %v432 = vunpack.c.l.b16 %v291
      %v433 = vunpack.c.h.b16 %v291
      %v434 = vunpack.c.l.b16 %v292
      %v435 = vunpack.c.h.b16 %v292
      %v436 = vunpack.c.l.b16 %v293
      %v437 = vunpack.c.l.b16 %v294
      %v438 = vunpack.c.h.b16 %v294
      %v439 = vunpack.c.l.b16 %v295
      %v440 = vunpack.c.h.b16 %v295
      %v441 = vunpack.c.l.b16 %v296
      %v442 = vunpack.c.h.b16 %v296
      %v443 = vunpack.c.l.b16 %v297
      %v444 = vunpack.c.l.b16 %v298
      %v445 = vunpack.c.h.b16 %v298
      %v446 = vunpack.c.l.b16 %v299
      %v447 = vunpack.c.h.b16 %v299
      %v448 = vunpack.c.l.b16 %v300
      %v449 = vunpack.c.h.b16 %v300
      %v450 = vunpack.c.l.b16 %v301
      %v451 = vpack.c.b16 %v430, %v423
      %v452 = vpack.c.b16 %v431, %v424
      %v453 = vpack.c.b16 %v432, %v425
      %v454 = vpack.c.b16 %v433, %v426
      %v455 = vpack.c.b16 %v434, %v427
      %v456 = vpack.c.b16 %v435, %v428
      %v457 = vpack.c.b16 %v436, %v429
      %v458 = vpack.c.b16 %v444, %v437
      %v459 = vpack.c.b16 %v445, %v438
      %v460 = vpack.c.b16 %v446, %v439
      %v461 = vpack.c.b16 %v447, %v440
      %v462 = vpack.c.b16 %v448, %v441
      %v463 = vpack.c.b16 %v449, %v442
      %v464 = vpack.c.b16 %v450, %v443
      %v575 = vunpack.c.l.b16 %v302
      %v576 = vunpack.c.l.b16 %v303
      %v577 = vunpack.c.l.b16 %v304
      %v578 = vunpack.c.l.b16 %v305
      %v579 = vunpack.c.l.b16 %v306
      %v580 = vunpack.c.l.b16 %v307
      %v581 = vunpack.c.l.b16 %v308
      %v582 = vunpack.c.l.b16 %v309
      %v583 = vunpack.c.l.b16 %v310
      %v584 = vunpack.c.l.b16 %v311
      %v585 = vunpack.c.l.b16 %v312
      %v586 = vunpack.c.l.b16 %v313
      %v587 = vunpack.c.l.b16 %v314
      %v588 = vunpack.c.l.b16 %v315
      %v589 = vunpack.c.l.b16 %v316
      %v590 = vunpack.c.l.b16 %v317
      %v591 = vunpack.c.l.b16 %v318
      %v592 = vunpack.c.l.b16 %v319
      %v593 = vunpack.c.l.b16 %v320
      %v594 = vunpack.c.l.b16 %v321
      %v595 = vunpack.c.l.b16 %v322
      %v596 = vunpack.c.l.b16 %v323
      %v597 = vunpack.c.l.b16 %v324
      %v598 = vunpack.c.l.b16 %v325
      %v599 = vunpack.c.l.b16 %v326
      %v600 = vunpack.c.l.b16 %v327
      %v601 = vunpack.c.l.b16 %v328
      %v602 = vunpack.c.l.b16 %v329
      %v603 = vunpack.c.l.b16 %v330
      %v604 = vunpack.c.l.b16 %v331
      %v605 = vunpack.c.l.b16 %v332
      %v606 = vunpack.c.l.b16 %v333
      %v607 = vunpack.c.l.b16 %v334
      %v608 = vunpack.c.l.b16 %v335
      %v609 = vunpack.c.l.b16 %v336
      %v610 = vunpack.c.l.b16 %v337
      %v611 = vunpack.c.l.b16 %v338
      %v612 = vunpack.c.l.b16 %v339
      %v613 = vunpack.c.l.b16 %v340
      %v614 = vunpack.c.l.b16 %v341
      %v615 = vunpack.c.l.b16 %v342
      %v616 = vunpack.c.l.b16 %v343
      %v617 = vunpack.c.l.b16 %v344
      %v618 = vunpack.c.l.b16 %v345
      %v619 = vunpack.c.l.b16 %v346
      %v620 = vunpack.c.l.b16 %v347
      %v621 = vunpack.c.l.b16 %v348
      %v622 = vunpack.c.l.b16 %v349
      %v623 = vunpack.c.l.b16 %v350
      %v624 = vunpack.c.l.b16 %v351
      %v625 = vunpack.c.l.b16 %v352
      %v626 = vunpack.c.l.b16 %v353
      %v627 = vunpack.c.l.b16 %v354
      %v628 = vunpack.c.l.b16 %v355
      %v629 = vunpack.c.l.b16 %v356
      %v630 = vunpack.c.l.b16 %v357
      %v631 = vunpack.c.l.b16 %v358
      %v632 = vunpack.c.l.b16 %v359
      %v633 = vunpack.c.l.b16 %v360
      %v634 = vunpack.c.l.b16 %v361
      %v635 = vunpack.c.l.b16 %v362
      %v636 = vunpack.c.l.b16 %v363
      %v637 = vunpack.c.l.b16 %v364
      %v638 = vunpack.c.l.b16 %v365
      %v639 = vunpack.c.l.b16 %v366
      %v640 = vunpack.c.l.b16 %v367
      %v641 = vunpack.c.l.b16 %v368
      %v642 = vunpack.c.l.b16 %v369
      %v643 = vunpack.c.l.b16 %v370
      %v644 = vunpack.c.l.b16 %v371
      %v645 = vunpack.c.l.b16 %v372
      %v646 = vunpack.c.l.b16 %v373
      %v647 = vunpack.c.l.b16 %v374
      %v648 = vunpack.c.l.b16 %v375
      %v649 = vunpack.c.l.b16 %v376
      %v650 = vunpack.c.l.b16 %v377
      %v651 = vunpack.c.l.b16 %v378
      %v652 = vunpack.c.l.b16 %v379
      %v653 = vunpack.c.l.b16 %v380
      %v654 = vunpack.c.l.b16 %v381
      %v655 = vunpack.c.l.b16 %v382
      %v656 = vunpack.c.l.b16 %v383
      %v657 = vunpack.c.l.b16 %v384
      %v658 = vunpack.c.l.b16 %v385
      %v659 = vunpack.c.l.b16 %v386
      %v660 = vunpack.c.l.b16 %v387
      %v661 = vunpack.c.l.b16 %v388
      %v662 = vunpack.c.l.b16 %v389
      %v663 = vunpack.c.l.b16 %v390
      %v664 = vunpack.c.l.b16 %v391
      %v665 = vunpack.c.l.b16 %v392
      %v666 = vunpack.c.l.b16 %v393
      %v667 = vunpack.c.l.b16 %v394
      %v668 = vunpack.c.l.b16 %v395
      %v669 = vunpack.c.l.b16 %v396
      %v670 = vunpack.c.l.b16 %v397
      %v671 = vunpack.c.l.b16 %v398
      %v672 = vunpack.c.l.b16 %v399
      %v673 = vpack.c.b16 %v576, %v575
      %v674 = vpack.c.b16 %v578, %v577
      %v675 = vpack.c.b16 %v580, %v579
      %v676 = vpack.c.b16 %v582, %v581
      %v677 = vpack.c.b16 %v584, %v583
      %v678 = vpack.c.b16 %v586, %v585
      %v679 = vpack.c.b16 %v588, %v587
      %v680 = vpack.c.b16 %v590, %v589
      %v681 = vpack.c.b16 %v592, %v591
      %v682 = vpack.c.b16 %v594, %v593
      %v683 = vpack.c.b16 %v596, %v595
      %v684 = vpack.c.b16 %v598, %v597
      %v685 = vpack.c.b16 %v600, %v599
      %v686 = vpack.c.b16 %v602, %v601
      %v687 = vpack.c.b16 %v604, %v603
      %v688 = vpack.c.b16 %v606, %v605
      %v689 = vpack.c.b16 %v608, %v607
      %v690 = vpack.c.b16 %v610, %v609
      %v691 = vpack.c.b16 %v612, %v611
      %v692 = vpack.c.b16 %v614, %v613
      %v693 = vpack.c.b16 %v616, %v615
      %v694 = vpack.c.b16 %v618, %v617
      %v695 = vpack.c.b16 %v620, %v619
      %v696 = vpack.c.b16 %v622, %v621
      %v697 = vpack.c.b16 %v624, %v623
      %v698 = vpack.c.b16 %v626, %v625
      %v699 = vpack.c.b16 %v628, %v627
      %v700 = vpack.c.b16 %v630, %v629
      %v701 = vpack.c.b16 %v632, %v631
      %v702 = vpack.c.b16 %v634, %v633
      %v703 = vpack.c.b16 %v636, %v635
      %v704 = vpack.c.b16 %v638, %v637
      %v705 = vpack.c.b16 %v640, %v639
      %v706 = vpack.c.b16 %v642, %v641
      %v707 = vpack.c.b16 %v644, %v643
      %v708 = vpack.c.b16 %v646, %v645
      %v709 = vpack.c.b16 %v648, %v647
      %v710 = vpack.c.b16 %v650, %v649
      %v711 = vpack.c.b16 %v652, %v651
      %v712 = vpack.c.b16 %v654, %v653
      %v713 = vpack.c.b16 %v656, %v655
      %v714 = vpack.c.b16 %v658, %v657
      %v715 = vpack.c.b16 %v660, %v659
      %v716 = vpack.c.b16 %v662, %v661
      %v717 = vpack.c.b16 %v664, %v663
      %v718 = vpack.c.b16 %v666, %v665
      %v719 = vpack.c.b16 %v668, %v667
      %v720 = vpack.c.b16 %v670, %v669
      %v721 = vpack.c.b16 %v672, %v671
      %vm771 = vcmask 130048
      %v773 = vsel %vm771, %v457, 0
      %v776 = vsel %vm771, %v464, 0
      %778 = vmatprep.subr.bf16.mxu0 0
      %779 = vmatpush1.bf16.msra.mxu0 %v673
      %780 = vmatprep.subr.bf16.mxu0 0
      %781 = vmatpush1.bf16.msra.mxu0 %v674
      %782 = vmatprep.subr.bf16.mxu0 0
      %783 = vmatpush1.bf16.msra.mxu0 %v675
      %784 = vmatprep.subr.bf16.mxu0 0
      %785 = vmatpush1.bf16.msra.mxu0 %v676
      %786 = vmatprep.subr.bf16.mxu0 0
      %787 = vmatpush1.bf16.msra.mxu0 %v677
      %788 = vmatprep.subr.bf16.mxu0 0
      %789 = vmatpush1.bf16.msra.mxu0 %v678
      %790 = vmatprep.subr.bf16.mxu0 0
      %791 = vmatpush1.bf16.msra.mxu0 %v679
      %792 = vmatprep.subr.bf16.mxu0 0
      %793 = vmatpush1.bf16.msra.mxu0 %v680
      %794 = vmatprep.subr.bf16.mxu0 0
      %795 = vmatpush1.bf16.msra.mxu0 %v681
      %796 = vmatprep.subr.bf16.mxu0 0
      %797 = vmatpush1.bf16.msra.mxu0 %v682
      %798 = vmatprep.subr.bf16.mxu0 0
      %799 = vmatpush1.bf16.msra.mxu0 %v683
      %800 = vmatprep.subr.bf16.mxu0 0
      %801 = vmatpush1.bf16.msra.mxu0 %v684
      %802 = vmatprep.subr.bf16.mxu0 0
      %803 = vmatpush1.bf16.msra.mxu0 %v685
      %804 = vmatprep.subr.bf16.mxu0 0
      %805 = vmatpush1.bf16.msra.mxu0 %v686
      %806 = vmatprep.subr.bf16.mxu0 0
      %807 = vmatpush1.bf16.msra.mxu0 %v687
      %808 = vmatprep.subr.bf16.mxu0 0
      %809 = vmatpush1.bf16.msra.mxu0 %v688
      %810 = vmatprep.mubr.bf16.mxu0 %v452
      %811 = vmatmul.mubr.bf16.gmra.mrb[0].mxu0 %v451
      %v812 = vpop.f32.mrb[0].mxu0
      %v813 = vadd.f32 %v405, %v812
      %v814 = vpop.f32.mrb[0].mxu0
      %v815 = vpop.f32.mrb[0].mxu0
      %v816 = vadd.f32 %v405, %v815
      %v817 = vpop.f32.mrb[0].mxu0
      %818 = vmatprep.mubr.bf16.mxu0 %v459
      %819 = vmatmul.mubr.bf16.gmra.mrb[0].mxu0 %v458
      %v820 = vpop.f32.mrb[0].mxu0
      %v821 = vadd.f32 %v405, %v820
      %v822 = vpop.f32.mrb[0].mxu0
      %v823 = vpop.f32.mrb[0].mxu0
      %v824 = vadd.f32 %v405, %v823
      %v825 = vpop.f32.mrb[0].mxu0
      %826 = vdwg.mxu0
      %827 = vmatprep.subr.bf16.mxu0 0
      %828 = vmatpush1.bf16.msra.mxu0 %v689
      %829 = vmatprep.subr.bf16.mxu0 0
      %830 = vmatpush1.bf16.msra.mxu0 %v690
      %831 = vmatprep.subr.bf16.mxu0 0
      %832 = vmatpush1.bf16.msra.mxu0 %v691
      %833 = vmatprep.subr.bf16.mxu0 0
      %834 = vmatpush1.bf16.msra.mxu0 %v692
      %835 = vmatprep.subr.bf16.mxu0 0
      %836 = vmatpush1.bf16.msra.mxu0 %v693
      %837 = vmatprep.subr.bf16.mxu0 0
      %838 = vmatpush1.bf16.msra.mxu0 %v694
      %839 = vmatprep.subr.bf16.mxu0 0
      %840 = vmatpush1.bf16.msra.mxu0 %v695
      %841 = vmatprep.subr.bf16.mxu0 0
      %842 = vmatpush1.bf16.msra.mxu0 %v696
      %843 = vmatprep.subr.bf16.mxu0 0
      %844 = vmatpush1.bf16.msra.mxu0 %v697
      %845 = vmatprep.subr.bf16.mxu0 0
      %846 = vmatpush1.bf16.msra.mxu0 %v698
      %847 = vmatprep.subr.bf16.mxu0 0
      %848 = vmatpush1.bf16.msra.mxu0 %v699
      %849 = vmatprep.subr.bf16.mxu0 0
      %850 = vmatpush1.bf16.msra.mxu0 %v700
      %851 = vmatprep.subr.bf16.mxu0 0
      %852 = vmatpush1.bf16.msra.mxu0 %v701
      %853 = vmatprep.subr.bf16.mxu0 0
      %854 = vmatpush1.bf16.msra.mxu0 %v702
      %855 = vmatprep.subr.bf16.mxu0 0
      %856 = vmatpush1.bf16.msra.mxu0 %v703
      %857 = vmatprep.subr.bf16.mxu0 0
      %858 = vmatpush1.bf16.msra.mxu0 %v704
      %859 = vmatprep.mubr.bf16.mxu0 %v454
      %860 = vmatmul.mubr.bf16.gmra.mrb[0].mxu0 %v453
      %v861 = vpop.f32.mrb[0].mxu0
      %v862 = vadd.f32 %v813, %v861
      %v863 = vpop.f32.mrb[0].mxu0
      %v864 = vpop.f32.mrb[0].mxu0
      %v865 = vadd.f32 %v816, %v864
      %v866 = vpop.f32.mrb[0].mxu0
      %867 = vmatprep.mubr.bf16.mxu0 %v461
      %868 = vmatmul.mubr.bf16.gmra.mrb[0].mxu0 %v460
      %v869 = vpop.f32.mrb[0].mxu0
      %v870 = vadd.f32 %v821, %v869
      %v871 = vpop.f32.mrb[0].mxu0
      %v872 = vpop.f32.mrb[0].mxu0
      %v873 = vadd.f32 %v824, %v872
      %v874 = vpop.f32.mrb[0].mxu0
      %875 = vdwg.mxu0
      %876 = vmatprep.subr.bf16.mxu0 0
      %877 = vmatpush1.bf16.msra.mxu0 %v705
      %878 = vmatprep.subr.bf16.mxu0 0
      %879 = vmatpush1.bf16.msra.mxu0 %v706
      %880 = vmatprep.subr.bf16.mxu0 0
      %881 = vmatpush1.bf16.msra.mxu0 %v707
      %882 = vmatprep.subr.bf16.mxu0 0
      %883 = vmatpush1.bf16.msra.mxu0 %v708
      %884 = vmatprep.subr.bf16.mxu0 0
      %885 = vmatpush1.bf16.msra.mxu0 %v709
      %886 = vmatprep.subr.bf16.mxu0 0
      %887 = vmatpush1.bf16.msra.mxu0 %v710
      %888 = vmatprep.subr.bf16.mxu0 0
      %889 = vmatpush1.bf16.msra.mxu0 %v711
      %890 = vmatprep.subr.bf16.mxu0 0
      %891 = vmatpush1.bf16.msra.mxu0 %v712
      %892 = vmatprep.subr.bf16.mxu0 0
      %893 = vmatpush1.bf16.msra.mxu0 %v713
      %894 = vmatprep.subr.bf16.mxu0 0
      %895 = vmatpush1.bf16.msra.mxu0 %v714
      %896 = vmatprep.subr.bf16.mxu0 0
      %897 = vmatpush1.bf16.msra.mxu0 %v715
      %898 = vmatprep.subr.bf16.mxu0 0
      %899 = vmatpush1.bf16.msra.mxu0 %v716
      %900 = vmatprep.subr.bf16.mxu0 0
      %901 = vmatpush1.bf16.msra.mxu0 %v717
      %902 = vmatprep.subr.bf16.mxu0 0
      %903 = vmatpush1.bf16.msra.mxu0 %v718
      %904 = vmatprep.subr.bf16.mxu0 0
      %905 = vmatpush1.bf16.msra.mxu0 %v719
      %906 = vmatprep.subr.bf16.mxu0 0
      %907 = vmatpush1.bf16.msra.mxu0 %v720
      %908 = vmatprep.mubr.bf16.mxu0 %v456
      %909 = vmatmul.mubr.bf16.gmra.mrb[0].mxu0 %v455
      %v910 = vpop.f32.mrb[0].mxu0
      %v911 = vadd.f32 %v862, %v910
      %v912 = vpop.f32.mrb[0].mxu0
      %v913 = vpop.f32.mrb[0].mxu0
      %v914 = vadd.f32 %v865, %v913
      %v915 = vpop.f32.mrb[0].mxu0
      %916 = vmatprep.mubr.bf16.mxu0 %v463
      %917 = vmatmul.mubr.bf16.gmra.mrb[0].mxu0 %v462
      %v918 = vpop.f32.mrb[0].mxu0
      %v919 = vadd.f32 %v870, %v918
      %v920 = vpop.f32.mrb[0].mxu0
      %v921 = vpop.f32.mrb[0].mxu0
      %v922 = vadd.f32 %v873, %v921
      %v923 = vpop.f32.mrb[0].mxu0
      %924 = vdwg.mxu0
      %925 = vmatprep.subr.bf16.mxu0 0
      %926 = vmatpush1.bf16.msra.mxu0 %v721
      %927 = vmatprep.subr.bf16.mxu0 0
      %928 = vmatpush1.bf16.msra.mxu0 0
      %929 = vmatprep.subr.bf16.mxu0 0
      %930 = vmatpush1.bf16.msra.mxu0 0
      %931 = vmatprep.subr.bf16.mxu0 0
      %932 = vmatpush1.bf16.msra.mxu0 0
      %933 = vmatprep.subr.bf16.mxu0 0
      %934 = vmatpush1.bf16.msra.mxu0 0
      %935 = vmatprep.subr.bf16.mxu0 0
      %936 = vmatpush1.bf16.msra.mxu0 0
      %937 = vmatprep.subr.bf16.mxu0 0
      %938 = vmatpush1.bf16.msra.mxu0 0
      %939 = vmatprep.subr.bf16.mxu0 0
      %940 = vmatpush1.bf16.msra.mxu0 0
      %941 = vmatprep.subr.bf16.mxu0 0
      %942 = vmatpush1.bf16.msra.mxu0 0
      %943 = vmatprep.subr.bf16.mxu0 0
      %944 = vmatpush1.bf16.msra.mxu0 0
      %945 = vmatprep.subr.bf16.mxu0 0
      %946 = vmatpush1.bf16.msra.mxu0 0
      %947 = vmatprep.subr.bf16.mxu0 0
      %948 = vmatpush1.bf16.msra.mxu0 0
      %949 = vmatprep.subr.bf16.mxu0 0
      %950 = vmatpush1.bf16.msra.mxu0 0
      %951 = vmatprep.subr.bf16.mxu0 0
      %952 = vmatpush1.bf16.msra.mxu0 0
      %953 = vmatprep.subr.bf16.mxu0 0
      %954 = vmatpush1.bf16.msra.mxu0 0
      %955 = vmatprep.subr.bf16.mxu0 0
      %956 = vmatpush1.bf16.msra.mxu0 0
      %957 = vmatprep.mubr.bf16.mxu0 0
      %958 = vmatmul.mubr.bf16.gmra.mrb[0].mxu0 %v773
      %v959 = vpop.f32.mrb[0].mxu0
      %v960 = vadd.f32 %v911, %v959
      %v961 = vpop.f32.mrb[0].mxu0
      %v962 = vpop.f32.mrb[0].mxu0
      %v963 = vadd.f32 %v914, %v962
      %v964 = vpop.f32.mrb[0].mxu0
      %965 = vmatprep.mubr.bf16.mxu0 0
      %966 = vmatmul.mubr.bf16.gmra.mrb[0].mxu0 %v776
      %v967 = vpop.f32.mrb[0].mxu0
      %v968 = vadd.f32 %v919, %v967
      %v969 = vpop.f32.mrb[0].mxu0
      %v970 = vpop.f32.mrb[0].mxu0
      %v971 = vadd.f32 %v922, %v970
      %v972 = vpop.f32.mrb[0].mxu0
      %973 = vdwg.mxu0
      %v974 = vmul.f32 %v960, 0.01
      %v975 = vmul.f32 %v963, 0.01
      %v976 = vmul.f32 %v968, 0.01
      %v977 = vmul.f32 %v971, 0.01
      %v978 = vmax.f32 %v960, %v974
      %v979 = vmax.f32 %v963, %v975
      %v980 = vmax.f32 %v968, %v976
      %v981 = vmax.f32 %v971, %v977
      %v982 = vpack.c.bf16 %v979, %v978
      %v983 = vpack.c.bf16 %v981, %v980
      %v984 = vld [vmem:[%s3] sm:$0xf]
      %v985 = vld [vmem:[%s3 + $0x4] sm:$0xf]
      %v986 = vld [vmem:[%s3 + $0x8] sm:$0xf]
      %v987 = vld [vmem:[%s3 + $0xc] sm:$0xf]
      %v988 = vld [vmem:[%s3 + $0x10] sm:$0xf]
      %v989 = vld [vmem:[%s3 + $0x14] sm:$0xf]
      %v990 = vld [vmem:[%s3 + $0x18] sm:$0xf]
      %v991 = vld [vmem:[%s3 + $0x1c] sm:$0xf]
      %v992 = vld [vmem:[%s3 + $0x20] sm:$0xf]
      %v993 = vld [vmem:[%s3 + $0x24] sm:$0xf]
      %v994 = vld [vmem:[%s3 + $0x28] sm:$0xf]
      %v995 = vld [vmem:[%s3 + $0x2c] sm:$0xf]
      %v996 = vld [vmem:[%s3 + $0x30] sm:$0xf]
      %v997 = vld [vmem:[%s3 + $0x34] sm:$0xf]
      %v998 = vld [vmem:[%s3 + $0x38] sm:$0xf]
      %v999 = vld [vmem:[%s3 + $0x3c] sm:$0xf]
      %v1000 = vld [vmem:[%s4] sm:$0x1]
      %v1002 = vlaneseq
      %v1003 = vshrl.u32 %v1002, 7
      %v1004 = vsub.s32 0, %v1003
      %v1005 = vrot.slane %v1000, %v1004
      %v1023 = vunpack.c.l.b16 %v984
      %v1024 = vunpack.c.l.b16 %v985
      %v1025 = vunpack.c.l.b16 %v986
      %v1026 = vunpack.c.l.b16 %v987
      %v1027 = vunpack.c.l.b16 %v988
      %v1028 = vunpack.c.l.b16 %v989
      %v1029 = vunpack.c.l.b16 %v990
      %v1030 = vunpack.c.l.b16 %v991
      %v1031 = vunpack.c.l.b16 %v992
      %v1032 = vunpack.c.l.b16 %v993
      %v1033 = vunpack.c.l.b16 %v994
      %v1034 = vunpack.c.l.b16 %v995
      %v1035 = vunpack.c.l.b16 %v996
      %v1036 = vunpack.c.l.b16 %v997
      %v1037 = vunpack.c.l.b16 %v998
      %v1038 = vunpack.c.l.b16 %v999
      %v1039 = vpack.c.b16 %v1024, %v1023
      %v1040 = vpack.c.b16 %v1026, %v1025
      %v1041 = vpack.c.b16 %v1028, %v1027
      %v1042 = vpack.c.b16 %v1030, %v1029
      %v1043 = vpack.c.b16 %v1032, %v1031
      %v1044 = vpack.c.b16 %v1034, %v1033
      %v1045 = vpack.c.b16 %v1036, %v1035
      %v1046 = vpack.c.b16 %v1038, %v1037
      %1055 = vmatprep.subr.bf16.mxu0 0
      %1056 = vmatpush1.bf16.msra.mxu0 %v1039
      %1057 = vmatprep.subr.bf16.mxu0 0
      %1058 = vmatpush1.bf16.msra.mxu0 %v1040
      %1059 = vmatprep.subr.bf16.mxu0 0
      %1060 = vmatpush1.bf16.msra.mxu0 %v1041
      %1061 = vmatprep.subr.bf16.mxu0 0
      %1062 = vmatpush1.bf16.msra.mxu0 %v1042
      %1063 = vmatprep.subr.bf16.mxu0 0
      %1064 = vmatpush1.bf16.msra.mxu0 %v1043
      %1065 = vmatprep.subr.bf16.mxu0 0
      %1066 = vmatpush1.bf16.msra.mxu0 %v1044
      %1067 = vmatprep.subr.bf16.mxu0 0
      %1068 = vmatpush1.bf16.msra.mxu0 %v1045
      %1069 = vmatprep.subr.bf16.mxu0 0
      %1070 = vmatpush1.bf16.msra.mxu0 %v1046
      %1071 = vmatprep.subr.bf16.mxu0 0
      %1072 = vmatpush1.bf16.msra.mxu0 0
      %1073 = vmatprep.subr.bf16.mxu0 0
      %1074 = vmatpush1.bf16.msra.mxu0 0
      %1075 = vmatprep.subr.bf16.mxu0 0
      %1076 = vmatpush1.bf16.msra.mxu0 0
      %1077 = vmatprep.subr.bf16.mxu0 0
      %1078 = vmatpush1.bf16.msra.mxu0 0
      %1079 = vmatprep.subr.bf16.mxu0 0
      %1080 = vmatpush1.bf16.msra.mxu0 0
      %1081 = vmatprep.subr.bf16.mxu0 0
      %1082 = vmatpush1.bf16.msra.mxu0 0
      %1083 = vmatprep.subr.bf16.mxu0 0
      %1084 = vmatpush1.bf16.msra.mxu0 0
      %1085 = vmatprep.subr.bf16.mxu0 0
      %1086 = vmatpush1.bf16.msra.mxu0 0
      %1087 = vmatprep.mubr.bf16.mxu0 0
      %1088 = vmatmul.mubr.bf16.gmra.mrb[0].mxu0 %v982
      %v1089 = vpop.f32.mrb[0].mxu0
      %v1090 = vadd.f32 %v1005, %v1089
      %v1091 = vpop.f32.mrb[0].mxu0
      %v1092 = vpop.f32.mrb[0].mxu0
      %v1093 = vadd.f32 %v1005, %v1092
      %v1094 = vpop.f32.mrb[0].mxu0
      %1095 = vmatprep.mubr.bf16.mxu0 0
      %1096 = vmatmul.mubr.bf16.gmra.mrb[0].mxu0 %v983
      %v1097 = vpop.f32.mrb[0].mxu0
      %v1098 = vadd.f32 %v1005, %v1097
      %v1099 = vpop.f32.mrb[0].mxu0
      %v1100 = vpop.f32.mrb[0].mxu0
      %v1101 = vadd.f32 %v1005, %v1100
      %v1102 = vpop.f32.mrb[0].mxu0
      %1103 = vdwg.mxu0
      %v1104 = vmul.f32 %v1090, 0.01
      %v1105 = vmul.f32 %v1093, 0.01
      %v1106 = vmul.f32 %v1098, 0.01
      %v1107 = vmul.f32 %v1101, 0.01
      %v1108 = vmax.f32 %v1090, %v1104
      %v1109 = vmax.f32 %v1093, %v1105
      %v1110 = vmax.f32 %v1098, %v1106
      %v1111 = vmax.f32 %v1101, %v1107
      %v1112 = vpack.c.bf16 %v1109, %v1108
      %v1113 = vpack.c.bf16 %v1111, %v1110
      %v1114 = vld [vmem:[%s5] sm:$0xf]
      %v1115 = vld [vmem:[%s5 + $0x4] sm:$0xf]
      %v1116 = vld [vmem:[%s5 + $0x8] sm:$0xf]
      %v1117 = vld [vmem:[%s5 + $0xc] sm:$0xf]
      %v1118 = vld [vmem:[%s5 + $0x10] sm:$0xf]
      %v1119 = vld [vmem:[%s5 + $0x14] sm:$0xf]
      %v1120 = vld [vmem:[%s5 + $0x18] sm:$0xf]
      %v1121 = vld [vmem:[%s5 + $0x1c] sm:$0xf]
      %v1122 = vld [vmem:[%s6] sm:$0x1]
      %v1124 = vlaneseq
      %v1125 = vshrl.u32 %v1124, 7
      %v1126 = vsub.s32 0, %v1125
      %v1127 = vrot.slane %v1122, %v1126
      %v1137 = vunpack.c.l.b16 %v1114
      %v1138 = vunpack.c.l.b16 %v1115
      %v1139 = vunpack.c.l.b16 %v1116
      %v1140 = vunpack.c.l.b16 %v1117
      %v1141 = vunpack.c.l.b16 %v1118
      %v1142 = vunpack.c.l.b16 %v1119
      %v1143 = vunpack.c.l.b16 %v1120
      %v1144 = vunpack.c.l.b16 %v1121
      %v1145 = vpack.c.b16 %v1138, %v1137
      %v1146 = vpack.c.b16 %v1140, %v1139
      %v1147 = vpack.c.b16 %v1142, %v1141
      %v1148 = vpack.c.b16 %v1144, %v1143
      %vm1153 = vcmask 523264
      %v1155 = vsel %vm1153, %v1112, 0
      %v1158 = vsel %vm1153, %v1113, 0
      %1160 = vmatprep.subr.bf16.mxu0 0
      %1161 = vmatpush1.bf16.msra.mxu0 %v1145
      %1162 = vmatprep.subr.bf16.mxu0 0
      %1163 = vmatpush1.bf16.msra.mxu0 %v1146
      %1164 = vmatprep.subr.bf16.mxu0 0
      %1165 = vmatpush1.bf16.msra.mxu0 %v1147
      %1166 = vmatprep.subr.bf16.mxu0 0
      %1167 = vmatpush1.bf16.msra.mxu0 %v1148
      %1168 = vmatprep.subr.bf16.mxu0 0
      %1169 = vmatpush1.bf16.msra.mxu0 0
      %1170 = vmatprep.subr.bf16.mxu0 0
      %1171 = vmatpush1.bf16.msra.mxu0 0
      %1172 = vmatprep.subr.bf16.mxu0 0
      %1173 = vmatpush1.bf16.msra.mxu0 0
      %1174 = vmatprep.subr.bf16.mxu0 0
      %1175 = vmatpush1.bf16.msra.mxu0 0
      %1176 = vmatprep.subr.bf16.mxu0 0
      %1177 = vmatpush1.bf16.msra.mxu0 0
      %1178 = vmatprep.subr.bf16.mxu0 0
      %1179 = vmatpush1.bf16.msra.mxu0 0
      %1180 = vmatprep.subr.bf16.mxu0 0
      %1181 = vmatpush1.bf16.msra.mxu0 0
      %1182 = vmatprep.subr.bf16.mxu0 0
      %1183 = vmatpush1.bf16.msra.mxu0 0
      %1184 = vmatprep.subr.bf16.mxu0 0
      %1185 = vmatpush1.bf16.msra.mxu0 0
      %1186 = vmatprep.subr.bf16.mxu0 0
      %1187 = vmatpush1.bf16.msra.mxu0 0
      %1188 = vmatprep.subr.bf16.mxu0 0
      %1189 = vmatpush1.bf16.msra.mxu0 0
      %1190 = vmatprep.subr.bf16.mxu0 0
      %1191 = vmatpush1.bf16.msra.mxu0 0
      %1192 = vmatprep.mubr.bf16.mxu0 0
      %1193 = vmatmul.mubr.bf16.gmra.mrb[0].mxu0 %v1155
      %v1194 = vpop.f32.mrb[0].mxu0
      %v1195 = vadd.f32 %v1127, %v1194
      %v1196 = vpop.f32.mrb[0].mxu0
      %v1197 = vpop.f32.mrb[0].mxu0
      %v1198 = vadd.f32 %v1127, %v1197
      %v1199 = vpop.f32.mrb[0].mxu0
      %1200 = vmatprep.mubr.bf16.mxu0 0
      %1201 = vmatmul.mubr.bf16.gmra.mrb[0].mxu0 %v1158
      %v1202 = vpop.f32.mrb[0].mxu0
      %v1203 = vadd.f32 %v1127, %v1202
      %v1204 = vpop.f32.mrb[0].mxu0
      %v1205 = vpop.f32.mrb[0].mxu0
      %v1206 = vadd.f32 %v1127, %v1205
      %v1207 = vpop.f32.mrb[0].mxu0
      %1208 = vdwg.mxu0
      %1209 = vst [vmem:[%s283] sm:$0xff] %v1195
      %1210 = vst [vmem:[%s283 + $0x8] sm:$0xff] %v1198
      %1211 = vst [vmem:[%s283 + $0x10] sm:$0xff] %v1203
      %1212 = vst [vmem:[%s283 + $0x18] sm:$0xff] %v1206
      %s1213 = smul.u32 4, %s18
      %p1214 = scmp.lt.s32.totalorder %s1213, 7
      %s1215 = scalar_select %p1214, %s1213, 7
      %s1216 = smul.addr %s1215, 8
      %s1217 = scalar_lea.vmem %s7, %s1216
      // Predicated region
      $region49: #{net_forward.1} parent=47 // pred_check
        %p1218 = pneg %p188
      $region50: #{net_forward.1} parent=47 // pred_check_branch
        %1220 = sbr.rel (%p1218) target = $region52
      $region51: #{net_forward.1} parent=47 // pred_region
        %s1221 = smul.u32 4, %s18
      $region52: #{net_forward.1} parent=47 // pred_fallthru
        _
    $region48: #{net_forward.1} parent=5 // pred_fallthru
      _
    %p1222 = scmp.le.s32.totalorder 2, %s13
    // Predicated region
    $region53: #{net_forward.1} parent=5 // pred_check
      %p1223 = pneg %p1222
    $region54: #{net_forward.1} parent=5 // pred_check_branch
      %1225 = sbr.rel (%p1223) target = $region56
    $region55: #{net_forward.1} parent=5 // pred_region
      %s1226 = ssub.s32 %s13, 2
      // Predicated region
      $region57: #{net_forward.1} parent=55 // pred_check
        %p1227 = pneg %p194
      $region58: #{net_forward.1} parent=55 // pred_check_branch
        %1229 = sbr.rel (%p1227) target = $region60
      $region59: #{net_forward.1} parent=55 // pred_region
        %s1230 = smul.u32 4, %s19
        %p1231 = scmp.lt.s32.totalorder %s1230, 7
        %s1232 = scalar_select %p1231, %s1230, 7
        %s1233 = smul.addr %s1232, 8
        %s1234 = scalar_lea.vmem %s7, %s1233
      $region60: #{net_forward.1} parent=55 // pred_fallthru
        _
    $region56: #{net_forward.1} parent=5 // pred_fallthru
      _
  $region6: #{net_forward.1} parent=0 // loop_footer
    %s17 = sadd.s32 1, %s13
  $region7: #{net_forward.1} parent=0 // loop_footer_branch
    %12 = sbr.rel target = $region3
  $region8: #{net_forward.1} parent=0 // loop_exit
    _

</llo_original>
